<compile_context>
chip_gen: v5e
topology: v5e:2x2
jax: 0.10.0
libtpu: 0.0.40
codegen_flags: <defaults>
</compile_context>

<pallas_src>
import functools

import jax
import jax.numpy as jnp
from jax.experimental import pallas as pl
from jax.experimental.pallas import tpu as pltpu


LANE = 128     # TPU lane width
TK_MAX = 1024  # P-reduction chunk cap (double-buffered bf16 chunks at 1024
               # are a few MiB — fine even against v7x's 64 MiB VMEM)
TM_MAX = 256   # batch tile cap (bigger tile => fewer w_img re-streams)


def _round_up(x, m):
    return (x + m - 1) // m * m


def _pick_tk(P, tk_max=TK_MAX):
    """Largest multiple of 128 <= tk_max that divides P (no P padding needed);
    falls back to a padded chunk otherwise."""
    t = (min(tk_max, max(P, LANE)) // LANE) * LANE
    while t >= LANE:
        if P % t == 0:
            return t
        t -= LANE
    return min(tk_max, _round_up(P, LANE))


def _pick_tm(Bp, tm_max=TM_MAX):
    """Largest multiple of 16 <= tm_max that divides Bp (Bp is a multiple of 16)."""
    t = (min(tm_max, Bp) // 16) * 16
    while t > 16 and Bp % t != 0:
        t -= 16
    return max(t, 16)


def _num_tensorcores():
    """Best-effort TensorCore count (v7x has 2 per chip). Defaults to 1."""
    try:
        dev = jax.devices()[0]
        n = getattr(dev, "num_cores", None)
        if n is None:
            kind = str(getattr(dev, "device_kind", "")).lower()
            n = 2 if "v7" in kind else 1
        return max(1, int(n))
    except Exception:
        return 1


def _resident_spec(shape):
    """Single-buffered BlockSpec for grid-invariant operands."""
    try:
        return pl.BlockSpec(shape, lambda i, k: (0, 0),
                            pipeline_mode=pl.Buffered(1))
    except Exception:  # older Pallas without pipeline_mode: fall back to default
        return pl.BlockSpec(shape, lambda i, k: (0, 0))


def cbm_kernel(x_ref, wimg_ref, cembT_ref, gamma_ref, beta_ref,
               wclsT_ref, bcls_ref, concept_ref, logits_ref, acc_ref,
               *, num_concepts):
    """Grid = (batch tiles, P reduction chunks).

    x_ref:      [tm, tk]  bf16 flattened-image chunk
    wimg_ref:   [tk, Dp]  bf16 frozen "encode_image" projection chunk
    cembT_ref:  [Dp, Cp]  f32  pre-normalized concept embeddings, transposed
    gamma/beta: [1,  Cp]  f32  LayerNorm affine (zero in padded lanes)
    wclsT_ref:  [Cp, Kp]  f32  classifier weight (transposed); bcls: [1, Kp]
    acc_ref:    [tm, Dp]  f32  VMEM accumulator for the backbone matmul
    """
    k = pl.program_id(1)

    @pl.when(k == 0)
    def _():
        acc_ref[...] = jnp.zeros_like(acc_ref)

    # "encode_image": frozen linear projection — bf16 MXU operands, f32 accum.
    acc_ref[...] += jnp.dot(x_ref[...], wimg_ref[...],
                            preferred_element_type=jnp.float32)

    # Epilogue once the reduction over P is complete.
    @pl.when(k == pl.num_programs(1) - 1)
    def _():
        vf = acc_ref[...]                                        # [tm, Dp] f32
        # visual_features / visual_features.norm(dim=-1, keepdim=True)
        # (padded D lanes are exactly 0, so they do not perturb the norm;
        #  tiny eps guards all-zero padded batch rows against inf/NaN).
        inv_norm = jax.lax.rsqrt(
            jnp.sum(vf * vf, axis=-1, keepdims=True) + 1e-12)
        vf = vf * inv_norm

        # concept_activations = visual_features @ concept_embeddings.T
        concepts = jnp.dot(vf, cembT_ref[...],
                           preferred_element_type=jnp.float32)   # [tm, Cp]
        concept_ref[...] = concepts

        # classifier = Flatten -> LayerNorm(C) -> Linear(C, K).
        # Padded concept lanes are exactly 0 (cembT padded cols are 0), so
        # plain sums over all lanes divided by the real C give exact stats;
        # padded gamma/beta/wclsT rows are 0, so padded lanes never leak.
        inv_c = 1.0 / num_concepts
        mean = jnp.sum(concepts, axis=-1, keepdims=True) * inv_c
        ex2 = jnp.sum(concepts * concepts, axis=-1, keepdims=True) * inv_c
        var = ex2 - mean * mean
        normed = (concepts - mean) * jax.lax.rsqrt(var + 1e-5)
        normed = normed * gamma_ref[...] + beta_ref[...]

        logits_ref[...] = (
            jnp.dot(normed, wclsT_ref[...], preferred_element_type=jnp.float32)
            + bcls_ref[...])


def prepare_clip_cbm_params(w_img, concept_emb, ln_gamma, ln_beta, w_cls, b_cls):
    """One-time preprocessing of the frozen weights (hoisted out of forward):
    concept-embedding row normalization, transposes, lane-dense zero padding,
    bf16 cast of the dominant backbone weight."""
    P, D = w_img.shape
    C = concept_emb.shape[0]
    K = w_cls.shape[0]

    tk = _pick_tk(P)
    Pp = _round_up(P, tk)
    Dp = _round_up(D, LANE)
    Cp = _round_up(C, LANE)
    Kp = _round_up(K, LANE)

    cemb = concept_emb / jnp.linalg.norm(concept_emb, axis=-1, keepdims=True)

    w_img_bf16 = w_img.astype(jnp.bfloat16)
    if (Pp, Dp) != (P, D):
        w_img_p = jnp.zeros((Pp, Dp), jnp.bfloat16).at[:P, :D].set(w_img_bf16)
    else:
        w_img_p = w_img_bf16
    cembT_p = jnp.zeros((Dp, Cp), jnp.float32).at[:D, :C].set(cemb.T)
    wclsT_p = jnp.zeros((Cp, Kp), jnp.float32).at[:C, :K].set(w_cls.T)
    gamma_p = jnp.zeros((1, Cp), jnp.float32).at[0, :C].set(ln_gamma)
    beta_p = jnp.zeros((1, Cp), jnp.float32).at[0, :C].set(ln_beta)
    bcls_p = jnp.zeros((1, Kp), jnp.float32).at[0, :K].set(b_cls)

    return dict(w_img=w_img_p, cembT=cembT_p, wclsT=wclsT_p, gamma=gamma_p,
                beta=beta_p, bcls=bcls_p, P=P, D=D, C=C, K=K, tk=tk)


def clip_cbm_forward(images_nchw, params, diffs):
    """images_nchw: [B, 3, H, W] float32.  Returns (concepts, logits, diffs)."""
    B = images_nchw.shape[0]
    P, C, K, tk = params["P"], params["C"], params["K"], params["tk"]
    Pp, Dp = params["w_img"].shape
    Cp = params["cembT"].shape[1]
    Kp = params["wclsT"].shape[1]

    # Per-call glue: flatten NCHW row-major, cast the MXU operand to bf16.
    # Only materialize a padded copy when padding is actually required
    # (batch to a multiple of 16 for bf16 sublane packing, P to the tile).
    Bp = max(_round_up(B, 16), 16)
    x = images_nchw.reshape(B, -1).astype(jnp.bfloat16)
    if (Bp, Pp) != (B, P):
        x = jnp.zeros((Bp, Pp), jnp.bfloat16).at[:B, :P].set(x)

    # Batch tile: as large as possible (fewer w_img re-streams), but split to
    # >= num_tensorcores tiles on multi-core parts (v7x) when divisible.
    tm = _pick_tm(Bp)
    n_tc = _num_tensorcores()
    if n_tc > 1 and (Bp // tm) < n_tc:
        cand = Bp // n_tc
        if cand >= 16 and cand % 16 == 0 and Bp % cand == 0:
            tm = cand

    grid = (Bp // tm, Pp // tk)
    num_btiles = grid[0]

    # VMEM budget derived from the actual footprint; clamp to 48 MiB so it is
    # safe against v7x's 64 MiB physical VMEM (v5e/v6e have 128 MiB).
    vmem_needed = (
        2 * tm * tk * 2                      # x chunks, double-buffered, bf16
        + 2 * tk * Dp * 2                    # w_img chunks, double-buffered, bf16
        + (Dp * Cp + Cp * Kp + 2 * Cp + Kp) * 4   # single-buffered invariants
        + tm * Dp * 4                        # f32 accumulator scratch
        + 2 * (tm * Cp + tm * Kp) * 4)       # output tiles (double-buffered)
    vmem_limit = int(min(max(2 * vmem_needed, 16 * 1024 * 1024),
                         48 * 1024 * 1024))

    flops = 2 * Bp * Pp * Dp + 2 * Bp * Dp * Cp + 2 * Bp * Cp * Kp
    bytes_accessed = (
        Bp * Pp * 2                                  # x streamed once (bf16)
        + num_btiles * Pp * Dp * 2                   # w_img re-streamed per batch tile
        + (Dp * Cp + Cp * Kp + 2 * Cp + Kp) * 4      # f32 weights
        + (Bp * Cp + Bp * Kp) * 4)                   # f32 outputs

    kernel = functools.partial(cbm_kernel, num_concepts=C)

    concepts_p, logits_p = pl.pallas_call(
        kernel,
        out_shape=(
            jax.ShapeDtypeStruct((Bp, Cp), jnp.float32),
            jax.ShapeDtypeStruct((Bp, Kp), jnp.float32),
        ),
        grid_spec=pltpu.PrefetchScalarGridSpec(
            num_scalar_prefetch=0,
            grid=grid,
            in_specs=[
                pl.BlockSpec((tm, tk), lambda i, k: (i, k)),    # x chunk
                pl.BlockSpec((tk, Dp), lambda i, k: (k, 0)),    # w_img chunk
                _resident_spec((Dp, Cp)),                        # cembT (resident)
                _resident_spec((1, Cp)),                         # gamma
                _resident_spec((1, Cp)),                         # beta
                _resident_spec((Cp, Kp)),                        # wclsT
                _resident_spec((1, Kp)),                         # bcls
            ],
            out_specs=(
                pl.BlockSpec((tm, Cp), lambda i, k: (i, 0)),    # concepts (lane-dense)
                pl.BlockSpec((tm, Kp), lambda i, k: (i, 0)),    # logits   (lane-dense)
            ),
            scratch_shapes=[pltpu.VMEM((tm, Dp), jnp.float32)],
        ),
        compiler_params=pltpu.CompilerParams(
            dimension_semantics=("parallel", "arbitrary"),
            vmem_limit_bytes=vmem_limit,
        ),
        cost_estimate=pl.CostEstimate(
            flops=flops, transcendentals=2 * Bp, bytes_accessed=bytes_accessed),
    )(x, params["w_img"], params["cembT"], params["gamma"], params["beta"],
      params["wclsT"], params["bcls"])

    return concepts_p[:B, :C], logits_p[:B, :K], diffs


def _reference_mixed(images_nchw, w_img, concept_emb, ln_gamma, ln_beta,
                     w_cls, b_cls):
    """Pure-JAX reference mirroring the kernel's precision choice
    (bf16 MXU operands for the backbone matmul, f32 everywhere else)."""
    B = images_nchw.shape[0]
    x = images_nchw.reshape(B, -1)
    vf = jnp.dot(x.astype(jnp.bfloat16).astype(jnp.float32),
                 w_img.astype(jnp.bfloat16).astype(jnp.float32))
    vf = vf / jnp.linalg.norm(vf, axis=-1, keepdims=True)
    cemb = concept_emb / jnp.linalg.norm(concept_emb, axis=-1, keepdims=True)
    concepts = vf @ cemb.T
    mean = concepts.mean(-1, keepdims=True)
    var = ((concepts - mean) ** 2).mean(-1, keepdims=True)
    ln = (concepts - mean) / jnp.sqrt(var + 1e-5) * ln_gamma + ln_beta
    logits = ln @ w_cls.T + b_cls
    return concepts, logits


def _reference_f32(images_nchw, w_img, concept_emb, ln_gamma, ln_beta,
                   w_cls, b_cls):
    """Full-f32 reference matching the PyTorch module's forward semantics."""
    B = images_nchw.shape[0]
    x = images_nchw.reshape(B, -1).astype(jnp.float32)
    vf = x @ w_img
    vf = vf / jnp.linalg.norm(vf, axis=-1, keepdims=True)
    cemb = concept_emb / jnp.linalg.norm(concept_emb, axis=-1, keepdims=True)
    concepts = vf @ cemb.T
    mean = concepts.mean(-1, keepdims=True)
    var = ((concepts - mean) ** 2).mean(-1, keepdims=True)
    ln = (concepts - mean) / jnp.sqrt(var + 1e-5) * ln_gamma + ln_beta
    logits = ln @ w_cls.T + b_cls
    return concepts, logits


if __name__ == "__main__":
    # Small, module-consistent shapes.
    B, CH, H, W = 2, 3, 16, 16          # images: NCHW
    D = 32                              # clip visual output_dim (feature_dim)
    NUM_CONCEPTS = 16                   # len(concept_names)
    NUM_CLASSES = 8                     # len(class_names)
    P = CH * H * W

    key = jax.random.PRNGKey(0)
    k_img, k_wimg, k_cemb, k_wcls, k_bcls, k_diff = jax.random.split(key, 6)

    images = jax.random.normal(k_img, (B, CH, H, W), dtype=jnp.float32)
    # TODO(synk): full CLIP ViT image encoder replaced by a frozen linear projection.
    w_img = jax.random.normal(k_wimg, (P, D), dtype=jnp.float32) * 0.02
    # TODO(synk): clip.encode_text concept embeddings replaced by deterministic randoms.
    concept_emb = jax.random.normal(k_cemb, (NUM_CONCEPTS, D), dtype=jnp.float32)
    ln_gamma = jnp.ones((NUM_CONCEPTS,), dtype=jnp.float32)   # LayerNorm default init
    ln_beta = jnp.zeros((NUM_CONCEPTS,), dtype=jnp.float32)
    w_cls = jax.random.normal(k_wcls, (NUM_CLASSES, NUM_CONCEPTS), dtype=jnp.float32) * 0.1
    b_cls = jax.random.normal(k_bcls, (NUM_CLASSES,), dtype=jnp.float32) * 0.1
    diffs = jax.random.normal(k_diff, (NUM_CLASSES, D), dtype=jnp.float32)  # domain_diffs

    # One-time (frozen) weight preparation, hoisted out of the forward path.
    params = prepare_clip_cbm_params(w_img, concept_emb, ln_gamma, ln_beta,
                                     w_cls, b_cls)

    concepts, logits, diffs_out = clip_cbm_forward(images, params, diffs)
    jax.block_until_ready((concepts, logits, diffs_out))

    assert concepts.shape == (B, NUM_CONCEPTS)
    assert logits.shape == (B, NUM_CLASSES)
    assert jnp.array_equal(diffs_out, diffs)

    # Tight check against a reference that uses the same MXU operand precision.
    ref_c, ref_l = _reference_mixed(images, w_img, concept_emb, ln_gamma,
                                    ln_beta, w_cls, b_cls)
    assert jnp.allclose(concepts, ref_c, atol=1e-4, rtol=1e-4)
    assert jnp.allclose(logits, ref_l, atol=1e-4, rtol=1e-4)

    # Sanity check against the full-f32 module semantics (bf16 operand rounding
    # on the backbone matmul bounds the difference).
    f32_c, f32_l = _reference_f32(images, w_img, concept_emb, ln_gamma,
                                  ln_beta, w_cls, b_cls)
    assert jnp.allclose(concepts, f32_c, atol=5e-2, rtol=5e-2)
    assert jnp.allclose(logits, f32_l, atol=5e-2, rtol=5e-2)

    print("KERNEL_OK")
</pallas_src>

<mosaic_0001>
module attributes {stable_mosaic.version = 11 : i64} {
  func.func @cbm_kernel(%arg0: i32, %arg1: i32, %arg2: memref<16x768xbf16, #tpu.memory_space<vmem>>, %arg3: memref<768x128xbf16, #tpu.memory_space<vmem>>, %arg4: memref<128x128xf32, #tpu.memory_space<vmem>>, %arg5: memref<1x128xf32, #tpu.memory_space<vmem>>, %arg6: memref<1x128xf32, #tpu.memory_space<vmem>>, %arg7: memref<128x128xf32, #tpu.memory_space<vmem>>, %arg8: memref<1x128xf32, #tpu.memory_space<vmem>>, %arg9: memref<16x128xf32, #tpu.memory_space<vmem>>, %arg10: memref<16x128xf32, #tpu.memory_space<vmem>>, %arg11: memref<16x128xf32, #tpu.memory_space<vmem>>) attributes {dimension_semantics = [#tpu.dimension_semantics<parallel>, #tpu.dimension_semantics<arbitrary>], iteration_bounds = array<i64: 1, 1>, scalar_prefetch = 0 : i64, scratch_operands = 1 : i64, tpu.core_type = #tpu.core_type<tc>, window_params = [{transform_indices = @transform_0, window_bounds = array<i64: 16, 768>}, {transform_indices = @transform_1, window_bounds = array<i64: 768, 128>}, {pipeline_mode = #tpu.pipeline_mode<synchronous>, transform_indices = @transform_2, window_bounds = array<i64: 128, 128>}, {pipeline_mode = #tpu.pipeline_mode<synchronous>, transform_indices = @transform_3, window_bounds = array<i64: 1, 128>}, {pipeline_mode = #tpu.pipeline_mode<synchronous>, transform_indices = @transform_4, window_bounds = array<i64: 1, 128>}, {pipeline_mode = #tpu.pipeline_mode<synchronous>, transform_indices = @transform_5, window_bounds = array<i64: 128, 128>}, {pipeline_mode = #tpu.pipeline_mode<synchronous>, transform_indices = @transform_6, window_bounds = array<i64: 1, 128>}, {transform_indices = @transform_7, window_bounds = array<i64: 16, 128>}, {transform_indices = @transform_8, window_bounds = array<i64: 16, 128>}]} {
    %c0_i32 = arith.constant 0 : i32
    %0 = arith.cmpi eq, %arg1, %c0_i32 : i32
    %1 = arith.extui %0 : i1 to i32
    %c0_i32_0 = arith.constant 0 : i32
    %2 = arith.cmpi ne, %1, %c0_i32_0 : i32
    scf.if %2 {
      %cst_10 = arith.constant 0.000000e+00 : f32
      %12 = vector.broadcast %cst_10 : f32 to vector<16x128xf32>
      %c0_11 = arith.constant 0 : index
      %c0_12 = arith.constant 0 : index
      %13 = vector.load %arg11[%c0_11, %c0_12] : memref<16x128xf32, #tpu.memory_space<vmem>>, vector<16x128xf32>
      tpu.vector_store %arg11[%c0_11, %c0_12], %12 {strides = array<i32>} : memref<16x128xf32, #tpu.memory_space<vmem>>, vector<16x128xf32>,
    } else {
    }
    %c0 = arith.constant 0 : index
    %c0_1 = arith.constant 0 : index
    %3 = vector.load %arg11[%c0, %c0_1] : memref<16x128xf32, #tpu.memory_space<vmem>>, vector<16x128xf32>
    %c0_2 = arith.constant 0 : index
    %c0_3 = arith.constant 0 : index
    %4 = vector.load %arg2[%c0_2, %c0_3] : memref<16x768xbf16, #tpu.memory_space<vmem>>, vector<16x768xbf16>
    %c0_4 = arith.constant 0 : index
    %c0_5 = arith.constant 0 : index
    %5 = vector.load %arg3[%c0_4, %c0_5] : memref<768x128xbf16, #tpu.memory_space<vmem>>, vector<768x128xbf16>
    %cst = arith.constant dense<0.000000e+00> : vector<16x128xf32>
    %6 = tpu.matmul %4, %5, %cst {dimension_numbers = #tpu.dot_dimension_numbers<[1], [0], [0], [1], [0, 0, 1, 1], [], []>} : vector<16x768xbf16>, vector<768x128xbf16>, vector<16x128xf32> -> vector<16x128xf32>
    %7 = arith.addf %3, %6 : vector<16x128xf32>
    %c0_6 = arith.constant 0 : index
    %c0_7 = arith.constant 0 : index
    %8 = vector.load %arg11[%c0_6, %c0_7] : memref<16x128xf32, #tpu.memory_space<vmem>>, vector<16x128xf32>
    tpu.vector_store %arg11[%c0_6, %c0_7], %7 {strides = array<i32>} : memref<16x128xf32, #tpu.memory_space<vmem>>, vector<16x128xf32>,
    %c0_i32_8 = arith.constant 0 : i32
    %9 = arith.cmpi eq, %arg1, %c0_i32_8 : i32
    %10 = arith.extui %9 : i1 to i32
    %c0_i32_9 = arith.constant 0 : i32
    %11 = arith.cmpi ne, %10, %c0_i32_9 : i32
    scf.if %11 {
      %c0_10 = arith.constant 0 : index
      %c0_11 = arith.constant 0 : index
      %12 = vector.load %arg11[%c0_10, %c0_11] : memref<16x128xf32, #tpu.memory_space<vmem>>, vector<16x128xf32>
      %13 = arith.mulf %12, %12 : vector<16x128xf32>
      %cst_12 = arith.constant dense<0.000000e+00> : vector<16xf32>
      %14 = vector.multi_reduction <add>, %13, %cst_12 [1] : vector<16x128xf32> to vector<16xf32>
      %15 = vector.shape_cast %14 : vector<16xf32> to vector<16x1xf32>
      %cst_13 = arith.constant 9.99999996E-13 : f32
      %16 = vector.broadcast %cst_13 : f32 to vector<16x1xf32>
      %17 = arith.addf %15, %16 : vector<16x1xf32>
      %18 = math.rsqrt %17 : vector<16x1xf32>
      %19 = vector.broadcast %18 : vector<16x1xf32> to vector<16x128xf32>
      %20 = arith.mulf %12, %19 : vector<16x128xf32>
      %c0_14 = arith.constant 0 : index
      %c0_15 = arith.constant 0 : index
      %21 = vector.load %arg4[%c0_14, %c0_15] : memref<128x128xf32, #tpu.memory_space<vmem>>, vector<128x128xf32>
      %cst_16 = arith.constant dense<0.000000e+00> : vector<16x128xf32>
      %22 = tpu.matmul %20, %21, %cst_16 {dimension_numbers = #tpu.dot_dimension_numbers<[1], [0], [0], [1], [0, 0, 1, 1], [], []>} : vector<16x128xf32>, vector<128x128xf32>, vector<16x128xf32> -> vector<16x128xf32>
      %c0_17 = arith.constant 0 : index
      %c0_18 = arith.constant 0 : index
      %23 = vector.load %arg9[%c0_17, %c0_18] : memref<16x128xf32, #tpu.memory_space<vmem>>, vector<16x128xf32>
      tpu.vector_store %arg9[%c0_17, %c0_18], %22 {strides = array<i32>} : memref<16x128xf32, #tpu.memory_space<vmem>>, vector<16x128xf32>,
      %cst_19 = arith.constant dense<0.000000e+00> : vector<16xf32>
      %24 = vector.multi_reduction <add>, %22, %cst_19 [1] : vector<16x128xf32> to vector<16xf32>
      %25 = vector.shape_cast %24 : vector<16xf32> to vector<16x1xf32>
      %cst_20 = arith.constant 6.250000e-02 : f32
      %26 = vector.broadcast %cst_20 : f32 to vector<16x1xf32>
      %27 = arith.mulf %25, %26 : vector<16x1xf32>
      %28 = arith.mulf %22, %22 : vector<16x128xf32>
      %cst_21 = arith.constant dense<0.000000e+00> : vector<16xf32>
      %29 = vector.multi_reduction <add>, %28, %cst_21 [1] : vector<16x128xf32> to vector<16xf32>
      %30 = vector.shape_cast %29 : vector<16xf32> to vector<16x1xf32>
      %cst_22 = arith.constant 6.250000e-02 : f32
      %31 = vector.broadcast %cst_22 : f32 to vector<16x1xf32>
      %32 = arith.mulf %30, %31 : vector<16x1xf32>
      %33 = arith.mulf %27, %27 : vector<16x1xf32>
      %34 = arith.subf %32, %33 : vector<16x1xf32>
      %35 = vector.broadcast %27 : vector<16x1xf32> to vector<16x128xf32>
      %36 = arith.subf %22, %35 : vector<16x128xf32>
      %cst_23 = arith.constant 9.99999974E-6 : f32
      %37 = vector.broadcast %cst_23 : f32 to vector<16x1xf32>
      %38 = arith.addf %34, %37 : vector<16x1xf32>
      %39 = math.rsqrt %38 : vector<16x1xf32>
      %40 = vector.broadcast %39 : vector<16x1xf32> to vector<16x128xf32>
      %41 = arith.mulf %36, %40 : vector<16x128xf32>
      %c0_24 = arith.constant 0 : index
      %c0_25 = arith.constant 0 : index
      %42 = vector.load %arg5[%c0_24, %c0_25] : memref<1x128xf32, #tpu.memory_space<vmem>>, vector<1x128xf32>
      %43 = vector.broadcast %42 : vector<1x128xf32> to vector<16x128xf32>
      %44 = arith.mulf %41, %43 : vector<16x128xf32>
      %c0_26 = arith.constant 0 : index
      %c0_27 = arith.constant 0 : index
      %45 = vector.load %arg6[%c0_26, %c0_27] : memref<1x128xf32, #tpu.memory_space<vmem>>, vector<1x128xf32>
      %46 = vector.broadcast %45 : vector<1x128xf32> to vector<16x128xf32>
      %47 = arith.addf %44, %46 : vector<16x128xf32>
      %c0_28 = arith.constant 0 : index
      %c0_29 = arith.constant 0 : index
      %48 = vector.load %arg7[%c0_28, %c0_29] : memref<128x128xf32, #tpu.memory_space<vmem>>, vector<128x128xf32>
      %cst_30 = arith.constant dense<0.000000e+00> : vector<16x128xf32>
      %49 = tpu.matmul %47, %48, %cst_30 {dimension_numbers = #tpu.dot_dimension_numbers<[1], [0], [0], [1], [0, 0, 1, 1], [], []>} : vector<16x128xf32>, vector<128x128xf32>, vector<16x128xf32> -> vector<16x128xf32>
      %c0_31 = arith.constant 0 : index
      %c0_32 = arith.constant 0 : index
      %50 = vector.load %arg8[%c0_31, %c0_32] : memref<1x128xf32, #tpu.memory_space<vmem>>, vector<1x128xf32>
      %51 = vector.broadcast %50 : vector<1x128xf32> to vector<16x128xf32>
      %52 = arith.addf %49, %51 : vector<16x128xf32>
      %c0_33 = arith.constant 0 : index
      %c0_34 = arith.constant 0 : index
      %53 = vector.load %arg10[%c0_33, %c0_34] : memref<16x128xf32, #tpu.memory_space<vmem>>, vector<16x128xf32>
      tpu.vector_store %arg10[%c0_33, %c0_34], %52 {strides = array<i32>} : memref<16x128xf32, #tpu.memory_space<vmem>>, vector<16x128xf32>,
    } else {
    }
    return
  }
  func.func @transform_0(%arg0: i32, %arg1: i32) -> (i32, i32) {
    %c0_i32 = arith.constant 0 : i32
    return %arg0, %arg1 : i32, i32
  }
  func.func @transform_1(%arg0: i32, %arg1: i32) -> (i32, i32) {
    %c0_i32 = arith.constant 0 : i32
    %c0_i32_0 = arith.constant 0 : i32
    return %arg1, %c0_i32 : i32, i32
  }
  func.func @transform_2(%arg0: i32, %arg1: i32) -> (i32, i32) {
    %c0_i32 = arith.constant 0 : i32
    %c0_i32_0 = arith.constant 0 : i32
    %c0_i32_1 = arith.constant 0 : i32
    return %c0_i32, %c0_i32_0 : i32, i32
  }
  func.func @transform_3(%arg0: i32, %arg1: i32) -> (i32, i32) {
    %c0_i32 = arith.constant 0 : i32
    %c0_i32_0 = arith.constant 0 : i32
    %c0_i32_1 = arith.constant 0 : i32
    return %c0_i32, %c0_i32_0 : i32, i32
  }
  func.func @transform_4(%arg0: i32, %arg1: i32) -> (i32, i32) {
    %c0_i32 = arith.constant 0 : i32
    %c0_i32_0 = arith.constant 0 : i32
    %c0_i32_1 = arith.constant 0 : i32
    return %c0_i32, %c0_i32_0 : i32, i32
  }
  func.func @transform_5(%arg0: i32, %arg1: i32) -> (i32, i32) {
    %c0_i32 = arith.constant 0 : i32
    %c0_i32_0 = arith.constant 0 : i32
    %c0_i32_1 = arith.constant 0 : i32
    return %c0_i32, %c0_i32_0 : i32, i32
  }
  func.func @transform_6(%arg0: i32, %arg1: i32) -> (i32, i32) {
    %c0_i32 = arith.constant 0 : i32
    %c0_i32_0 = arith.constant 0 : i32
    %c0_i32_1 = arith.constant 0 : i32
    return %c0_i32, %c0_i32_0 : i32, i32
  }
  func.func @transform_7(%arg0: i32, %arg1: i32) -> (i32, i32) {
    %c0_i32 = arith.constant 0 : i32
    %c0_i32_0 = arith.constant 0 : i32
    return %arg0, %c0_i32 : i32, i32
  }
  func.func @transform_8(%arg0: i32, %arg1: i32) -> (i32, i32) {
    %c0_i32 = arith.constant 0 : i32
    %c0_i32_0 = arith.constant 0 : i32
    return %arg0, %c0_i32 : i32, i32
  }
}

</mosaic_0001>

<llo_original>
// kernel: tpu_custom_call.1
$region0: #{tpu_custom_call.1}
  #allocation0 [shape = 'u32[]', space=smem, size = 0x4, offset = 0x4, fixed_abs, tag = 'smem constant byte address 0x4 - core index']
  #allocation1 [shape = 'u32[72,128]{1,0:T(1,128)}', space=vmem, size = 0x9000, scoped, tag = 'internal scratch']
  #allocation2 [shape = 'f32[16,128]{1,0:T(8,128)}', space=vmem, size = 0x2000, scoped, tag = 'scratch operand']
  %s0 = inlined_call_operand.hbm [shape: bf16[16,768], index: 0, kind: input, shape index: {}]
  %s1 = inlined_call_operand.hbm [shape: bf16[768,128], index: 1, kind: input, shape index: {}]
  %s2 = inlined_call_operand.hbm [shape: f32[128,128], index: 2, kind: input, shape index: {}]
  %s3 = inlined_call_operand.vmem [shape: f32[1,128], index: 3, kind: input, shape index: {}]
  %s4 = inlined_call_operand.vmem [shape: f32[1,128], index: 4, kind: input, shape index: {}]
  %s5 = inlined_call_operand.hbm [shape: f32[128,128], index: 5, kind: input, shape index: {}]
  %s6 = inlined_call_operand.vmem [shape: f32[1,128], index: 6, kind: input, shape index: {}]
  %s7 = inlined_call_operand.hbm [shape: f32[16,128], index: 7, kind: output, shape index: {0}]
  %s8 = inlined_call_operand.hbm [shape: f32[16,128], index: 8, kind: output, shape index: {1}]
  %9 = xla_tuple %s7, %s8
  %s10 = sld [smem:[#allocation0]]
  $region70: #{tpu_custom_call.1} parent=0
    _
  %s12 = ssub.s32 1, %s10
  %s13 = scalar_select 0, %s12, %s10
  $region1: #{tpu_custom_call.1} parent=0
    #allocation3 [shape = 'u8[24576]{0}', space=vmem, size = 0x6000, scoped, tag = 'input window, operand 0, single buffered']
    #allocation4 [shape = 's32[1]{0}', space=sflag, size = 0x4, scoped, tag = 'scoped memory for tpu_custom_call.1']
    #allocation5 [shape = 's32[1]{0}', space=sflag, size = 0x4, scoped, tag = 'scoped memory for tpu_custom_call.1']
    #allocation6 [shape = 'u8[196608]{0}', space=vmem, size = 0x30000, scoped, tag = 'input window, operand 1, single buffered']
    #allocation7 [shape = 's32[1]{0}', space=sflag, size = 0x4, scoped, tag = 'scoped memory for tpu_custom_call.1']
    #allocation8 [shape = 'u8[65536]{0}', space=vmem, size = 0x10000, scoped, tag = 'input window, operand 2, single buffered']
    #allocation9 [shape = 'u8[65536]{0}', space=vmem, size = 0x10000, scoped, tag = 'input window, operand 5, single buffered']
    #allocation10 [shape = 's32[1]{0}', space=sflag, size = 0x4, scoped, tag = 'scoped memory for tpu_custom_call.1']
    #allocation11 [shape = 'u8[8192]{0}', space=vmem, size = 0x2000, scoped, tag = 'output window, operand 0, single buffered']
    #allocation12 [shape = 'u8[8192]{0}', space=vmem, size = 0x2000, scoped, tag = 'output window, operand 1, single buffered']
    #allocation13 [shape = 's32[1]{0}', space=sflag, size = 0x4, scoped, tag = 'scoped memory for tpu_custom_call.1']
    %14 = vsyncpa [#allocation4], 0
    %15 = vsyncpa [#allocation7], 0
    %16 = vsyncpa [#allocation10], 0
    %17 = vsyncpa [#allocation5], 0
    %18 = vsyncpa [#allocation13], 0
    // Predicated region
    $region2: #{tpu_custom_call.1} parent=1 // pred_check
      _
    $region3: #{tpu_custom_call.1} parent=1 // pred_check_branch
      %20 = sbr.rel (0) target = $region5
    $region4: #{tpu_custom_call.1} parent=1 // pred_region
      %22 = vsyncadd [#allocation4], 0
      %s23 = sshll.u32 %s0, 4
      %s24 = int_to_ptr.hbm [resolvable:$true] %s23
      %s25 = sshll.u32 [#allocation3], 4
      %s26 = int_to_ptr.vmem [resolvable:$true] %s25
      %31 = dma.hbm_to_vmem [thread:$0]  %s24, 768, %s26, [#allocation4], 384, 384, 24
    $region5: #{tpu_custom_call.1} parent=1 // pred_fallthru
      _
    // Predicated region
    $region6: #{tpu_custom_call.1} parent=1 // pred_check
      _
    $region7: #{tpu_custom_call.1} parent=1 // pred_check_branch
      %33 = sbr.rel (0) target = $region9
    $region8: #{tpu_custom_call.1} parent=1 // pred_region
      %35 = vsyncadd [#allocation7], 0
      %s36 = sshll.u32 %s1, 4
      %s37 = int_to_ptr.hbm [resolvable:$true] %s36
      %s38 = sshll.u32 [#allocation6], 4
      %s39 = int_to_ptr.vmem [resolvable:$true] %s38
      %44 = dma.hbm_to_vmem [thread:$0]  %s37, 6144, %s39, [#allocation7], 64, 64, 4
    $region9: #{tpu_custom_call.1} parent=1 // pred_fallthru
      _
    // Predicated region
    $region10: #{tpu_custom_call.1} parent=1 // pred_check
      _
    $region11: #{tpu_custom_call.1} parent=1 // pred_check_branch
      %46 = sbr.rel (0) target = $region13
    $region12: #{tpu_custom_call.1} parent=1 // pred_region
      %48 = vsyncadd [#allocation7], 0
      %s49 = sshll.u32 %s2, 4
      %s50 = int_to_ptr.hbm [resolvable:$true] %s49
      %s51 = sshll.u32 [#allocation8], 4
      %s52 = int_to_ptr.vmem [resolvable:$true] %s51
      %57 = dma.hbm_to_vmem [thread:$0]  %s50, 2048, %s52, [#allocation7], 128, 128, 8
    $region13: #{tpu_custom_call.1} parent=1 // pred_fallthru
      _
    // Predicated region
    $region14: #{tpu_custom_call.1} parent=1 // pred_check
      _
    $region15: #{tpu_custom_call.1} parent=1 // pred_check_branch
      %59 = sbr.rel (0) target = $region17
    $region16: #{tpu_custom_call.1} parent=1 // pred_region
      _
    $region17: #{tpu_custom_call.1} parent=1 // pred_fallthru
      _
    // Predicated region
    $region18: #{tpu_custom_call.1} parent=1 // pred_check
      _
    $region19: #{tpu_custom_call.1} parent=1 // pred_check_branch
      %61 = sbr.rel (0) target = $region21
    $region20: #{tpu_custom_call.1} parent=1 // pred_region
      _
    $region21: #{tpu_custom_call.1} parent=1 // pred_fallthru
      _
    // Predicated region
    $region22: #{tpu_custom_call.1} parent=1 // pred_check
      _
    $region23: #{tpu_custom_call.1} parent=1 // pred_check_branch
      %63 = sbr.rel (0) target = $region25
    $region24: #{tpu_custom_call.1} parent=1 // pred_region
      %65 = vsyncadd [#allocation10], 0
      %s66 = sshll.u32 %s5, 4
      %s67 = int_to_ptr.hbm [resolvable:$true] %s66
      %s68 = sshll.u32 [#allocation9], 4
      %s69 = int_to_ptr.vmem [resolvable:$true] %s68
      %74 = dma.hbm_to_vmem [thread:$0]  %s67, 2048, %s69, [#allocation10], 128, 128, 8
    $region25: #{tpu_custom_call.1} parent=1 // pred_fallthru
      _
    // Predicated region
    $region26: #{tpu_custom_call.1} parent=1 // pred_check
      _
    $region27: #{tpu_custom_call.1} parent=1 // pred_check_branch
      %76 = sbr.rel (0) target = $region29
    $region28: #{tpu_custom_call.1} parent=1 // pred_region
      _
    $region29: #{tpu_custom_call.1} parent=1 // pred_fallthru
      _
    // Predicated region
    $region30: #{tpu_custom_call.1} parent=1 // pred_check
      _
    $region31: #{tpu_custom_call.1} parent=1 // pred_check_branch
      %78 = sbr.rel (0) target = $region33
    $region32: #{tpu_custom_call.1} parent=1 // pred_region
      %80 = dma.done [#allocation4], 768
    $region33: #{tpu_custom_call.1} parent=1 // pred_fallthru
      _
    // Predicated region
    $region34: #{tpu_custom_call.1} parent=1 // pred_check
      _
    $region35: #{tpu_custom_call.1} parent=1 // pred_check_branch
      %82 = sbr.rel (0) target = $region37
    $region36: #{tpu_custom_call.1} parent=1 // pred_region
      %84 = dma.done [#allocation7], 6144
    $region37: #{tpu_custom_call.1} parent=1 // pred_fallthru
      _
    // Predicated region
    $region38: #{tpu_custom_call.1} parent=1 // pred_check
      _
    $region39: #{tpu_custom_call.1} parent=1 // pred_check_branch
      %86 = sbr.rel (0) target = $region41
    $region40: #{tpu_custom_call.1} parent=1 // pred_region
      %88 = dma.done [#allocation7], 2048
    $region41: #{tpu_custom_call.1} parent=1 // pred_fallthru
      _
    // Predicated region
    $region42: #{tpu_custom_call.1} parent=1 // pred_check
      _
    $region43: #{tpu_custom_call.1} parent=1 // pred_check_branch
      %90 = sbr.rel (0) target = $region45
    $region44: #{tpu_custom_call.1} parent=1 // pred_region
      %92 = dma.done [#allocation10], 2048
    $region45: #{tpu_custom_call.1} parent=1 // pred_fallthru
      _
    %p93 = scmp.eq.s32.totalorder 0, 0
    // Predicated region
    $region46: #{tpu_custom_call.1} parent=1 // pred_check
      %p94 = pneg %p93
    $region47: #{tpu_custom_call.1} parent=1 // pred_check_branch
      %96 = sbr.rel (%p94) target = $region49
    $region48: #{tpu_custom_call.1} parent=1 // pred_region
      %97 = vst [vmem:[#allocation2] sm:$0xff] 0.0
      %98 = vst [vmem:[#allocation2 + $0x8] sm:$0xff] 0.0
    $region49: #{tpu_custom_call.1} parent=1 // pred_fallthru
      _
    %v99 = vld [vmem:[#allocation2] sm:$0xff]
    %v100 = vld [vmem:[#allocation2 + $0x8] sm:$0xff]
    %v101 = vld [vmem:[#allocation3] sm:$0xff]
    %v102 = vld [vmem:[#allocation3 + $0x8] sm:$0xff]
    %v103 = vld [vmem:[#allocation3 + $0x10] sm:$0xff]
    %v104 = vld [vmem:[#allocation3 + $0x18] sm:$0xff]
    %v105 = vld [vmem:[#allocation3 + $0x20] sm:$0xff]
    %v106 = vld [vmem:[#allocation3 + $0x28] sm:$0xff]
    %v107 = vld [vmem:[#allocation6] sm:$0xf]
    %v108 = vld [vmem:[#allocation6 + $0x4] sm:$0xf]
    %v109 = vld [vmem:[#allocation6 + $0x8] sm:$0xf]
    %v110 = vld [vmem:[#allocation6 + $0xc] sm:$0xf]
    %v111 = vld [vmem:[#allocation6 + $0x10] sm:$0xf]
    %v112 = vld [vmem:[#allocation6 + $0x14] sm:$0xf]
    %v113 = vld [vmem:[#allocation6 + $0x18] sm:$0xf]
    %v114 = vld [vmem:[#allocation6 + $0x1c] sm:$0xf]
    %v115 = vld [vmem:[#allocation6 + $0x20] sm:$0xf]
    %v116 = vld [vmem:[#allocation6 + $0x24] sm:$0xf]
    %v117 = vld [vmem:[#allocation6 + $0x28] sm:$0xf]
    %v118 = vld [vmem:[#allocation6 + $0x2c] sm:$0xf]
    %v119 = vld [vmem:[#allocation6 + $0x30] sm:$0xf]
    %v120 = vld [vmem:[#allocation6 + $0x34] sm:$0xf]
    %v121 = vld [vmem:[#allocation6 + $0x38] sm:$0xf]
    %v122 = vld [vmem:[#allocation6 + $0x3c] sm:$0xf]
    %v123 = vld [vmem:[#allocation6 + $0x40] sm:$0xf]
    %v124 = vld [vmem:[#allocation6 + $0x44] sm:$0xf]
    %v125 = vld [vmem:[#allocation6 + $0x48] sm:$0xf]
    %v126 = vld [vmem:[#allocation6 + $0x4c] sm:$0xf]
    %v127 = vld [vmem:[#allocation6 + $0x50] sm:$0xf]
    %v128 = vld [vmem:[#allocation6 + $0x54] sm:$0xf]
    %v129 = vld [vmem:[#allocation6 + $0x58] sm:$0xf]
    %v130 = vld [vmem:[#allocation6 + $0x5c] sm:$0xf]
    %v131 = vld [vmem:[#allocation6 + $0x60] sm:$0xf]
    %v132 = vld [vmem:[#allocation6 + $0x64] sm:$0xf]
    %v133 = vld [vmem:[#allocation6 + $0x68] sm:$0xf]
    %v134 = vld [vmem:[#allocation6 + $0x6c] sm:$0xf]
    %v135 = vld [vmem:[#allocation6 + $0x70] sm:$0xf]
    %v136 = vld [vmem:[#allocation6 + $0x74] sm:$0xf]
    %v137 = vld [vmem:[#allocation6 + $0x78] sm:$0xf]
    %v138 = vld [vmem:[#allocation6 + $0x7c] sm:$0xf]
    %v139 = vld [vmem:[#allocation6 + $0x80] sm:$0xf]
    %v140 = vld [vmem:[#allocation6 + $0x84] sm:$0xf]
    %v141 = vld [vmem:[#allocation6 + $0x88] sm:$0xf]
    %v142 = vld [vmem:[#allocation6 + $0x8c] sm:$0xf]
    %v143 = vld [vmem:[#allocation6 + $0x90] sm:$0xf]
    %v144 = vld [vmem:[#allocation6 + $0x94] sm:$0xf]
    %v145 = vld [vmem:[#allocation6 + $0x98] sm:$0xf]
    %v146 = vld [vmem:[#allocation6 + $0x9c] sm:$0xf]
    %v147 = vld [vmem:[#allocation6 + $0xa0] sm:$0xf]
    %v148 = vld [vmem:[#allocation6 + $0xa4] sm:$0xf]
    %v149 = vld [vmem:[#allocation6 + $0xa8] sm:$0xf]
    %v150 = vld [vmem:[#allocation6 + $0xac] sm:$0xf]
    %v151 = vld [vmem:[#allocation6 + $0xb0] sm:$0xf]
    %v152 = vld [vmem:[#allocation6 + $0xb4] sm:$0xf]
    %v153 = vld [vmem:[#allocation6 + $0xb8] sm:$0xf]
    %v154 = vld [vmem:[#allocation6 + $0xbc] sm:$0xf]
    %v155 = vld [vmem:[#allocation6 + $0xc0] sm:$0xf]
    %v156 = vld [vmem:[#allocation6 + $0xc4] sm:$0xf]
    %v157 = vld [vmem:[#allocation6 + $0xc8] sm:$0xf]
    %v158 = vld [vmem:[#allocation6 + $0xcc] sm:$0xf]
    %v159 = vld [vmem:[#allocation6 + $0xd0] sm:$0xf]
    %v160 = vld [vmem:[#allocation6 + $0xd4] sm:$0xf]
    %v161 = vld [vmem:[#allocation6 + $0xd8] sm:$0xf]
    %v162 = vld [vmem:[#allocation6 + $0xdc] sm:$0xf]
    %v163 = vld [vmem:[#allocation6 + $0xe0] sm:$0xf]
    %v164 = vld [vmem:[#allocation6 + $0xe4] sm:$0xf]
    %v165 = vld [vmem:[#allocation6 + $0xe8] sm:$0xf]
    %v166 = vld [vmem:[#allocation6 + $0xec] sm:$0xf]
    %v167 = vld [vmem:[#allocation6 + $0xf0] sm:$0xf]
    %v168 = vld [vmem:[#allocation6 + $0xf4] sm:$0xf]
    %v169 = vld [vmem:[#allocation6 + $0xf8] sm:$0xf]
    %v170 = vld [vmem:[#allocation6 + $0xfc] sm:$0xf]
    %v171 = vld [vmem:[#allocation6 + $0x100] sm:$0xf]
    %v172 = vld [vmem:[#allocation6 + $0x104] sm:$0xf]
    %v173 = vld [vmem:[#allocation6 + $0x108] sm:$0xf]
    %v174 = vld [vmem:[#allocation6 + $0x10c] sm:$0xf]
    %v175 = vld [vmem:[#allocation6 + $0x110] sm:$0xf]
    %v176 = vld [vmem:[#allocation6 + $0x114] sm:$0xf]
    %v177 = vld [vmem:[#allocation6 + $0x118] sm:$0xf]
    %v178 = vld [vmem:[#allocation6 + $0x11c] sm:$0xf]
    %v179 = vld [vmem:[#allocation6 + $0x120] sm:$0xf]
    %v180 = vld [vmem:[#allocation6 + $0x124] sm:$0xf]
    %v181 = vld [vmem:[#allocation6 + $0x128] sm:$0xf]
    %v182 = vld [vmem:[#allocation6 + $0x12c] sm:$0xf]
    %v183 = vld [vmem:[#allocation6 + $0x130] sm:$0xf]
    %v184 = vld [vmem:[#allocation6 + $0x134] sm:$0xf]
    %v185 = vld [vmem:[#allocation6 + $0x138] sm:$0xf]
    %v186 = vld [vmem:[#allocation6 + $0x13c] sm:$0xf]
    %v187 = vld [vmem:[#allocation6 + $0x140] sm:$0xf]
    %v188 = vld [vmem:[#allocation6 + $0x144] sm:$0xf]
    %v189 = vld [vmem:[#allocation6 + $0x148] sm:$0xf]
    %v190 = vld [vmem:[#allocation6 + $0x14c] sm:$0xf]
    %v191 = vld [vmem:[#allocation6 + $0x150] sm:$0xf]
    %v192 = vld [vmem:[#allocation6 + $0x154] sm:$0xf]
    %v193 = vld [vmem:[#allocation6 + $0x158] sm:$0xf]
    %v194 = vld [vmem:[#allocation6 + $0x15c] sm:$0xf]
    %v195 = vld [vmem:[#allocation6 + $0x160] sm:$0xf]
    %v196 = vld [vmem:[#allocation6 + $0x164] sm:$0xf]
    %v197 = vld [vmem:[#allocation6 + $0x168] sm:$0xf]
    %v198 = vld [vmem:[#allocation6 + $0x16c] sm:$0xf]
    %v199 = vld [vmem:[#allocation6 + $0x170] sm:$0xf]
    %v200 = vld [vmem:[#allocation6 + $0x174] sm:$0xf]
    %v201 = vld [vmem:[#allocation6 + $0x178] sm:$0xf]
    %v202 = vld [vmem:[#allocation6 + $0x17c] sm:$0xf]
    %v209 = vunpack.c.l.b16 %v101
    %v210 = vunpack.c.h.b16 %v101
    %v211 = vunpack.c.l.b16 %v102
    %v212 = vunpack.c.h.b16 %v102
    %v213 = vunpack.c.l.b16 %v103
    %v214 = vunpack.c.h.b16 %v103
    %v215 = vunpack.c.l.b16 %v104
    %v216 = vunpack.c.h.b16 %v104
    %v217 = vunpack.c.l.b16 %v105
    %v218 = vunpack.c.h.b16 %v105
    %v219 = vunpack.c.l.b16 %v106
    %v220 = vunpack.c.h.b16 %v106
    %v221 = vpack.c.b16 %v215, %v209
    %v222 = vpack.c.b16 %v216, %v210
    %v223 = vpack.c.b16 %v217, %v211
    %v224 = vpack.c.b16 %v218, %v212
    %v225 = vpack.c.b16 %v219, %v213
    %v226 = vpack.c.b16 %v220, %v214
    %v329 = vunpack.c.l.b16 %v107
    %v330 = vunpack.c.l.b16 %v108
    %v331 = vunpack.c.l.b16 %v109
    %v332 = vunpack.c.l.b16 %v110
    %v333 = vunpack.c.l.b16 %v111
    %v334 = vunpack.c.l.b16 %v112
    %v335 = vunpack.c.l.b16 %v113
    %v336 = vunpack.c.l.b16 %v114
    %v337 = vunpack.c.l.b16 %v115
    %v338 = vunpack.c.l.b16 %v116
    %v339 = vunpack.c.l.b16 %v117
    %v340 = vunpack.c.l.b16 %v118
    %v341 = vunpack.c.l.b16 %v119
    %v342 = vunpack.c.l.b16 %v120
    %v343 = vunpack.c.l.b16 %v121
    %v344 = vunpack.c.l.b16 %v122
    %v345 = vunpack.c.l.b16 %v123
    %v346 = vunpack.c.l.b16 %v124
    %v347 = vunpack.c.l.b16 %v125
    %v348 = vunpack.c.l.b16 %v126
    %v349 = vunpack.c.l.b16 %v127
    %v350 = vunpack.c.l.b16 %v128
    %v351 = vunpack.c.l.b16 %v129
    %v352 = vunpack.c.l.b16 %v130
    %v353 = vunpack.c.l.b16 %v131
    %v354 = vunpack.c.l.b16 %v132
    %v355 = vunpack.c.l.b16 %v133
    %v356 = vunpack.c.l.b16 %v134
    %v357 = vunpack.c.l.b16 %v135
    %v358 = vunpack.c.l.b16 %v136
    %v359 = vunpack.c.l.b16 %v137
    %v360 = vunpack.c.l.b16 %v138
    %v361 = vunpack.c.l.b16 %v139
    %v362 = vunpack.c.l.b16 %v140
    %v363 = vunpack.c.l.b16 %v141
    %v364 = vunpack.c.l.b16 %v142
    %v365 = vunpack.c.l.b16 %v143
    %v366 = vunpack.c.l.b16 %v144
    %v367 = vunpack.c.l.b16 %v145
    %v368 = vunpack.c.l.b16 %v146
    %v369 = vunpack.c.l.b16 %v147
    %v370 = vunpack.c.l.b16 %v148
    %v371 = vunpack.c.l.b16 %v149
    %v372 = vunpack.c.l.b16 %v150
    %v373 = vunpack.c.l.b16 %v151
    %v374 = vunpack.c.l.b16 %v152
    %v375 = vunpack.c.l.b16 %v153
    %v376 = vunpack.c.l.b16 %v154
    %v377 = vunpack.c.l.b16 %v155
    %v378 = vunpack.c.l.b16 %v156
    %v379 = vunpack.c.l.b16 %v157
    %v380 = vunpack.c.l.b16 %v158
    %v381 = vunpack.c.l.b16 %v159
    %v382 = vunpack.c.l.b16 %v160
    %v383 = vunpack.c.l.b16 %v161
    %v384 = vunpack.c.l.b16 %v162
    %v385 = vunpack.c.l.b16 %v163
    %v386 = vunpack.c.l.b16 %v164
    %v387 = vunpack.c.l.b16 %v165
    %v388 = vunpack.c.l.b16 %v166
    %v389 = vunpack.c.l.b16 %v167
    %v390 = vunpack.c.l.b16 %v168
    %v391 = vunpack.c.l.b16 %v169
    %v392 = vunpack.c.l.b16 %v170
    %v393 = vunpack.c.l.b16 %v171
    %v394 = vunpack.c.l.b16 %v172
    %v395 = vunpack.c.l.b16 %v173
    %v396 = vunpack.c.l.b16 %v174
    %v397 = vunpack.c.l.b16 %v175
    %v398 = vunpack.c.l.b16 %v176
    %v399 = vunpack.c.l.b16 %v177
    %v400 = vunpack.c.l.b16 %v178
    %v401 = vunpack.c.l.b16 %v179
    %v402 = vunpack.c.l.b16 %v180
    %v403 = vunpack.c.l.b16 %v181
    %v404 = vunpack.c.l.b16 %v182
    %v405 = vunpack.c.l.b16 %v183
    %v406 = vunpack.c.l.b16 %v184
    %v407 = vunpack.c.l.b16 %v185
    %v408 = vunpack.c.l.b16 %v186
    %v409 = vunpack.c.l.b16 %v187
    %v410 = vunpack.c.l.b16 %v188
    %v411 = vunpack.c.l.b16 %v189
    %v412 = vunpack.c.l.b16 %v190
    %v413 = vunpack.c.l.b16 %v191
    %v414 = vunpack.c.l.b16 %v192
    %v415 = vunpack.c.l.b16 %v193
    %v416 = vunpack.c.l.b16 %v194
    %v417 = vunpack.c.l.b16 %v195
    %v418 = vunpack.c.l.b16 %v196
    %v419 = vunpack.c.l.b16 %v197
    %v420 = vunpack.c.l.b16 %v198
    %v421 = vunpack.c.l.b16 %v199
    %v422 = vunpack.c.l.b16 %v200
    %v423 = vunpack.c.l.b16 %v201
    %v424 = vunpack.c.l.b16 %v202
    %v425 = vpack.c.b16 %v330, %v329
    %v426 = vpack.c.b16 %v332, %v331
    %v427 = vpack.c.b16 %v334, %v333
    %v428 = vpack.c.b16 %v336, %v335
    %v429 = vpack.c.b16 %v338, %v337
    %v430 = vpack.c.b16 %v340, %v339
    %v431 = vpack.c.b16 %v342, %v341
    %v432 = vpack.c.b16 %v344, %v343
    %v433 = vpack.c.b16 %v346, %v345
    %v434 = vpack.c.b16 %v348, %v347
    %v435 = vpack.c.b16 %v350, %v349
    %v436 = vpack.c.b16 %v352, %v351
    %v437 = vpack.c.b16 %v354, %v353
    %v438 = vpack.c.b16 %v356, %v355
    %v439 = vpack.c.b16 %v358, %v357
    %v440 = vpack.c.b16 %v360, %v359
    %v441 = vpack.c.b16 %v362, %v361
    %v442 = vpack.c.b16 %v364, %v363
    %v443 = vpack.c.b16 %v366, %v365
    %v444 = vpack.c.b16 %v368, %v367
    %v445 = vpack.c.b16 %v370, %v369
    %v446 = vpack.c.b16 %v372, %v371
    %v447 = vpack.c.b16 %v374, %v373
    %v448 = vpack.c.b16 %v376, %v375
    %v449 = vpack.c.b16 %v378, %v377
    %v450 = vpack.c.b16 %v380, %v379
    %v451 = vpack.c.b16 %v382, %v381
    %v452 = vpack.c.b16 %v384, %v383
    %v453 = vpack.c.b16 %v386, %v385
    %v454 = vpack.c.b16 %v388, %v387
    %v455 = vpack.c.b16 %v390, %v389
    %v456 = vpack.c.b16 %v392, %v391
    %v457 = vpack.c.b16 %v394, %v393
    %v458 = vpack.c.b16 %v396, %v395
    %v459 = vpack.c.b16 %v398, %v397
    %v460 = vpack.c.b16 %v400, %v399
    %v461 = vpack.c.b16 %v402, %v401
    %v462 = vpack.c.b16 %v404, %v403
    %v463 = vpack.c.b16 %v406, %v405
    %v464 = vpack.c.b16 %v408, %v407
    %v465 = vpack.c.b16 %v410, %v409
    %v466 = vpack.c.b16 %v412, %v411
    %v467 = vpack.c.b16 %v414, %v413
    %v468 = vpack.c.b16 %v416, %v415
    %v469 = vpack.c.b16 %v418, %v417
    %v470 = vpack.c.b16 %v420, %v419
    %v471 = vpack.c.b16 %v422, %v421
    %v472 = vpack.c.b16 %v424, %v423
    %521 = vmatpush.bf16.msra.mxu0 %v432
    %522 = vmatpush.bf16.msra.mxu0 %v431
    %523 = vmatpush.bf16.msra.mxu0 %v430
    %524 = vmatpush.bf16.msra.mxu0 %v429
    %525 = vmatpush.bf16.msra.mxu0 %v428
    %526 = vmatpush.bf16.msra.mxu0 %v427
    %527 = vmatpush.bf16.msra.mxu0 %v426
    %528 = vmatpush.bf16.msra.mxu0 %v425
    %529 = vmatmul.bf16.gmra.mxu0 %v221
    %v530 = vpop.f32.mrf.mxu0
    %v531 = vadd.f32 0.0, %v530
    %v532 = vpop.f32.mrf.mxu0
    %v533 = vadd.f32 0.0, %v532
    %534 = vdwg.mxu0
    %535 = vmatpush.bf16.msra.mxu0 %v440
    %536 = vmatpush.bf16.msra.mxu0 %v439
    %537 = vmatpush.bf16.msra.mxu0 %v438
    %538 = vmatpush.bf16.msra.mxu0 %v437
    %539 = vmatpush.bf16.msra.mxu0 %v436
    %540 = vmatpush.bf16.msra.mxu0 %v435
    %541 = vmatpush.bf16.msra.mxu0 %v434
    %542 = vmatpush.bf16.msra.mxu0 %v433
    %543 = vmatmul.bf16.gmra.mxu0 %v222
    %v544 = vpop.f32.mrf.mxu0
    %v545 = vadd.f32 %v531, %v544
    %v546 = vpop.f32.mrf.mxu0
    %v547 = vadd.f32 %v533, %v546
    %548 = vdwg.mxu0
    %549 = vmatpush.bf16.msra.mxu0 %v448
    %550 = vmatpush.bf16.msra.mxu0 %v447
    %551 = vmatpush.bf16.msra.mxu0 %v446
    %552 = vmatpush.bf16.msra.mxu0 %v445
    %553 = vmatpush.bf16.msra.mxu0 %v444
    %554 = vmatpush.bf16.msra.mxu0 %v443
    %555 = vmatpush.bf16.msra.mxu0 %v442
    %556 = vmatpush.bf16.msra.mxu0 %v441
    %557 = vmatmul.bf16.gmra.mxu0 %v223
    %v558 = vpop.f32.mrf.mxu0
    %v559 = vadd.f32 %v545, %v558
    %v560 = vpop.f32.mrf.mxu0
    %v561 = vadd.f32 %v547, %v560
    %562 = vdwg.mxu0
    %563 = vmatpush.bf16.msra.mxu0 %v456
    %564 = vmatpush.bf16.msra.mxu0 %v455
    %565 = vmatpush.bf16.msra.mxu0 %v454
    %566 = vmatpush.bf16.msra.mxu0 %v453
    %567 = vmatpush.bf16.msra.mxu0 %v452
    %568 = vmatpush.bf16.msra.mxu0 %v451
    %569 = vmatpush.bf16.msra.mxu0 %v450
    %570 = vmatpush.bf16.msra.mxu0 %v449
    %571 = vmatmul.bf16.gmra.mxu0 %v224
    %v572 = vpop.f32.mrf.mxu0
    %v573 = vadd.f32 %v559, %v572
    %v574 = vpop.f32.mrf.mxu0
    %v575 = vadd.f32 %v561, %v574
    %576 = vdwg.mxu0
    %577 = vmatpush.bf16.msra.mxu0 %v464
    %578 = vmatpush.bf16.msra.mxu0 %v463
    %579 = vmatpush.bf16.msra.mxu0 %v462
    %580 = vmatpush.bf16.msra.mxu0 %v461
    %581 = vmatpush.bf16.msra.mxu0 %v460
    %582 = vmatpush.bf16.msra.mxu0 %v459
    %583 = vmatpush.bf16.msra.mxu0 %v458
    %584 = vmatpush.bf16.msra.mxu0 %v457
    %585 = vmatmul.bf16.gmra.mxu0 %v225
    %v586 = vpop.f32.mrf.mxu0
    %v587 = vadd.f32 %v573, %v586
    %v588 = vpop.f32.mrf.mxu0
    %v589 = vadd.f32 %v575, %v588
    %590 = vdwg.mxu0
    %591 = vmatpush.bf16.msra.mxu0 %v472
    %592 = vmatpush.bf16.msra.mxu0 %v471
    %593 = vmatpush.bf16.msra.mxu0 %v470
    %594 = vmatpush.bf16.msra.mxu0 %v469
    %595 = vmatpush.bf16.msra.mxu0 %v468
    %596 = vmatpush.bf16.msra.mxu0 %v467
    %597 = vmatpush.bf16.msra.mxu0 %v466
    %598 = vmatpush.bf16.msra.mxu0 %v465
    %599 = vmatmul.bf16.gmra.mxu0 %v226
    %v600 = vpop.f32.mrf.mxu0
    %v601 = vadd.f32 %v587, %v600
    %v602 = vpop.f32.mrf.mxu0
    %v603 = vadd.f32 %v589, %v602
    %604 = vdwg.mxu0
    %v605 = vadd.f32 %v99, %v601
    %v606 = vadd.f32 %v100, %v603
    %607 = vst [vmem:[#allocation2] sm:$0xff] %v605
    %608 = vst [vmem:[#allocation2 + $0x8] sm:$0xff] %v606
    // Predicated region
    $region50: #{tpu_custom_call.1} parent=1 // pred_check
      %p609 = pneg %p93
    $region51: #{tpu_custom_call.1} parent=1 // pred_check_branch
      %611 = sbr.rel (%p609) target = $region53
    $region52: #{tpu_custom_call.1} parent=1 // pred_region
      %v612 = vld [vmem:[#allocation2] sm:$0xff]
      %v613 = vld [vmem:[#allocation2 + $0x8] sm:$0xff]
      %v614 = vmul.f32 %v612, %v612
      %v615 = vmul.f32 %v613, %v613
      %616 = vadd.xlane.f32.xlu0 %v614
      %v617 = vpop.xlane.xlu0 %616
      %618 = vadd.xlane.f32.xlu0 %v615
      %v619 = vpop.xlane.xlu0 %618
      %v620 = vadd.f32 %v617, 1e-12
      %v621 = vadd.f32 %v619, 1e-12
      %v622 = vrsqrt.pop %v620
      %v623 = vmul.f32 %v622, %v620
      %v624 = vmul.f32 %v623, %v622
      %v625 = vmul.f32 0.5, %v624
      %v626 = vsub.f32 1.5, %v625
      %v627 = vmul.f32 %v622, %v626
      %vm628 = vweird.f32 %v620
      %vm629 = vweird.f32 %v622
      %vm630 = vmor %vm628, %vm629
      %v631 = vsel %vm630, %v622, %v627
      %v632 = vrsqrt.pop %v621
      %v633 = vmul.f32 %v632, %v621
      %v634 = vmul.f32 %v633, %v632
      %v635 = vmul.f32 0.5, %v634
      %v636 = vsub.f32 1.5, %v635
      %v637 = vmul.f32 %v632, %v636
      %vm638 = vweird.f32 %v621
      %vm639 = vweird.f32 %v632
      %vm640 = vmor %vm638, %vm639
      %v641 = vsel %vm640, %v632, %v637
      %v642 = vmul.f32 %v612, %v631
      %v643 = vmul.f32 %v613, %v641
      %v644 = vld [vmem:[#allocation8] sm:$0xff]
      %v645 = vld [vmem:[#allocation8 + $0x8] sm:$0xff]
      %v646 = vld [vmem:[#allocation8 + $0x10] sm:$0xff]
      %v647 = vld [vmem:[#allocation8 + $0x18] sm:$0xff]
      %v648 = vld [vmem:[#allocation8 + $0x20] sm:$0xff]
      %v649 = vld [vmem:[#allocation8 + $0x28] sm:$0xff]
      %v650 = vld [vmem:[#allocation8 + $0x30] sm:$0xff]
      %v651 = vld [vmem:[#allocation8 + $0x38] sm:$0xff]
      %v652 = vld [vmem:[#allocation8 + $0x40] sm:$0xff]
      %v653 = vld [vmem:[#allocation8 + $0x48] sm:$0xff]
      %v654 = vld [vmem:[#allocation8 + $0x50] sm:$0xff]
      %v655 = vld [vmem:[#allocation8 + $0x58] sm:$0xff]
      %v656 = vld [vmem:[#allocation8 + $0x60] sm:$0xff]
      %v657 = vld [vmem:[#allocation8 + $0x68] sm:$0xff]
      %v658 = vld [vmem:[#allocation8 + $0x70] sm:$0xff]
      %v659 = vld [vmem:[#allocation8 + $0x78] sm:$0xff]
      %660 = vmatpush.msra.mxu0 %v659
      %661 = vmatpush.msra.mxu0 %v658
      %662 = vmatpush.msra.mxu0 %v657
      %663 = vmatpush.msra.mxu0 %v656
      %664 = vmatpush.msra.mxu0 %v655
      %665 = vmatpush.msra.mxu0 %v654
      %666 = vmatpush.msra.mxu0 %v653
      %667 = vmatpush.msra.mxu0 %v652
      %668 = vmatpush.msra.mxu0 %v651
      %669 = vmatpush.msra.mxu0 %v650
      %670 = vmatpush.msra.mxu0 %v649
      %671 = vmatpush.msra.mxu0 %v648
      %672 = vmatpush.msra.mxu0 %v647
      %673 = vmatpush.msra.mxu0 %v646
      %674 = vmatpush.msra.mxu0 %v645
      %675 = vmatpush.msra.mxu0 %v644
      %676 = vmatmul.f32.gmra.mxu0 %v642
      %v677 = vpop.f32.mrf.mxu0
      %v678 = vadd.f32 0.0, %v677
      %679 = vmatmul.f32.gmra.mxu0 %v643
      %v680 = vpop.f32.mrf.mxu0
      %v681 = vadd.f32 0.0, %v680
      %682 = vdwg.mxu0
      %683 = vst [vmem:[#allocation11] sm:$0xff] %v678
      %684 = vst [vmem:[#allocation11 + $0x8] sm:$0xff] %v681
      %685 = vadd.xlane.f32.xlu0 %v678
      %v686 = vpop.xlane.xlu0 %685
      %687 = vadd.xlane.f32.xlu0 %v681
      %v688 = vpop.xlane.xlu0 %687
      %v689 = vmul.f32 %v686, 0.0625
      %v690 = vmul.f32 %v688, 0.0625
      %v691 = vmul.f32 %v678, %v678
      %v692 = vmul.f32 %v681, %v681
      %693 = vadd.xlane.f32.xlu0 %v691
      %v694 = vpop.xlane.xlu0 %693
      %695 = vadd.xlane.f32.xlu0 %v692
      %v696 = vpop.xlane.xlu0 %695
      %v697 = vmul.f32 %v694, 0.0625
      %v698 = vmul.f32 %v696, 0.0625
      %v699 = vmul.f32 %v689, %v689
      %v700 = vmul.f32 %v690, %v690
      %v701 = vsub.f32 %v697, %v699
      %v702 = vsub.f32 %v698, %v700
      %v703 = vsub.f32 %v678, %v689
      %v704 = vsub.f32 %v681, %v690
      %v705 = vadd.f32 %v701, 1e-05
      %v706 = vadd.f32 %v702, 1e-05
      %v707 = vrsqrt.pop %v705
      %v708 = vmul.f32 %v707, %v705
      %v709 = vmul.f32 %v708, %v707
      %v710 = vmul.f32 0.5, %v709
      %v711 = vsub.f32 1.5, %v710
      %v712 = vmul.f32 %v707, %v711
      %vm713 = vweird.f32 %v705
      %vm714 = vweird.f32 %v707
      %vm715 = vmor %vm713, %vm714
      %v716 = vsel %vm715, %v707, %v712
      %v717 = vrsqrt.pop %v706
      %v718 = vmul.f32 %v717, %v706
      %v719 = vmul.f32 %v718, %v717
      %v720 = vmul.f32 0.5, %v719
      %v721 = vsub.f32 1.5, %v720
      %v722 = vmul.f32 %v717, %v721
      %vm723 = vweird.f32 %v706
      %vm724 = vweird.f32 %v717
      %vm725 = vmor %vm723, %vm724
      %v726 = vsel %vm725, %v717, %v722
      %v727 = vmul.f32 %v703, %v716
      %v728 = vmul.f32 %v704, %v726
      %v729 = vld [vmem:[%s3] sm:$0x1]
      %v731 = vperm.slane %v729, 0
      %v733 = vmul.f32 %v727, %v731
      %v734 = vmul.f32 %v728, %v731
      %v735 = vld [vmem:[%s4] sm:$0x1]
      %v737 = vperm.slane %v735, 0
      %v739 = vadd.f32 %v733, %v737
      %v740 = vadd.f32 %v734, %v737
      %v741 = vld [vmem:[#allocation9] sm:$0xff]
      %v742 = vld [vmem:[#allocation9 + $0x8] sm:$0xff]
      %v743 = vld [vmem:[#allocation9 + $0x10] sm:$0xff]
      %v744 = vld [vmem:[#allocation9 + $0x18] sm:$0xff]
      %v745 = vld [vmem:[#allocation9 + $0x20] sm:$0xff]
      %v746 = vld [vmem:[#allocation9 + $0x28] sm:$0xff]
      %v747 = vld [vmem:[#allocation9 + $0x30] sm:$0xff]
      %v748 = vld [vmem:[#allocation9 + $0x38] sm:$0xff]
      %v749 = vld [vmem:[#allocation9 + $0x40] sm:$0xff]
      %v750 = vld [vmem:[#allocation9 + $0x48] sm:$0xff]
      %v751 = vld [vmem:[#allocation9 + $0x50] sm:$0xff]
      %v752 = vld [vmem:[#allocation9 + $0x58] sm:$0xff]
      %v753 = vld [vmem:[#allocation9 + $0x60] sm:$0xff]
      %v754 = vld [vmem:[#allocation9 + $0x68] sm:$0xff]
      %v755 = vld [vmem:[#allocation9 + $0x70] sm:$0xff]
      %v756 = vld [vmem:[#allocation9 + $0x78] sm:$0xff]
      %v757 = vld [vmem:[%s6] sm:$0x1]
      %v759 = vperm.slane %v757, 0
      %761 = vmatpush.msra.mxu0 %v756
      %762 = vmatpush.msra.mxu0 %v755
      %763 = vmatpush.msra.mxu0 %v754
      %764 = vmatpush.msra.mxu0 %v753
      %765 = vmatpush.msra.mxu0 %v752
      %766 = vmatpush.msra.mxu0 %v751
      %767 = vmatpush.msra.mxu0 %v750
      %768 = vmatpush.msra.mxu0 %v749
      %769 = vmatpush.msra.mxu0 %v748
      %770 = vmatpush.msra.mxu0 %v747
      %771 = vmatpush.msra.mxu0 %v746
      %772 = vmatpush.msra.mxu0 %v745
      %773 = vmatpush.msra.mxu0 %v744
      %774 = vmatpush.msra.mxu0 %v743
      %775 = vmatpush.msra.mxu0 %v742
      %776 = vmatpush.msra.mxu0 %v741
      %777 = vmatmul.f32.gmra.mxu0 %v739
      %v778 = vpop.f32.mrf.mxu0
      %v779 = vadd.f32 %v759, %v778
      %780 = vmatmul.f32.gmra.mxu0 %v740
      %v781 = vpop.f32.mrf.mxu0
      %v782 = vadd.f32 %v759, %v781
      %783 = vdwg.mxu0
      %784 = vst [vmem:[#allocation12] sm:$0xff] %v779
      %785 = vst [vmem:[#allocation12 + $0x8] sm:$0xff] %v782
    $region53: #{tpu_custom_call.1} parent=1 // pred_fallthru
      _
    // Predicated region
    $region54: #{tpu_custom_call.1} parent=1 // pred_check
      _
    $region55: #{tpu_custom_call.1} parent=1 // pred_check_branch
      %787 = sbr.rel (0) target = $region57
    $region56: #{tpu_custom_call.1} parent=1 // pred_region
      %789 = vsyncadd [#allocation5], 0
      %s790 = sshll.u32 [#allocation11], 4
      %s791 = int_to_ptr.vmem [resolvable:$true] %s790
      %s792 = sshll.u32 %s7, 4
      %s793 = int_to_ptr.hbm [resolvable:$true] %s792
      %798 = dma.vmem_to_hbm [thread:$0]  %s791, 256, %s793, [#allocation5], 128, 128, 8
    $region57: #{tpu_custom_call.1} parent=1 // pred_fallthru
      _
    // Predicated region
    $region58: #{tpu_custom_call.1} parent=1 // pred_check
      _
    $region59: #{tpu_custom_call.1} parent=1 // pred_check_branch
      %800 = sbr.rel (0) target = $region61
    $region60: #{tpu_custom_call.1} parent=1 // pred_region
      %802 = vsyncadd [#allocation13], 0
      %s803 = sshll.u32 [#allocation12], 4
      %s804 = int_to_ptr.vmem [resolvable:$true] %s803
      %s805 = sshll.u32 %s8, 4
      %s806 = int_to_ptr.hbm [resolvable:$true] %s805
      %811 = dma.vmem_to_hbm [thread:$0]  %s804, 256, %s806, [#allocation13], 128, 128, 8
    $region61: #{tpu_custom_call.1} parent=1 // pred_fallthru
      _
    // Predicated region
    $region62: #{tpu_custom_call.1} parent=1 // pred_check
      _
    $region63: #{tpu_custom_call.1} parent=1 // pred_check_branch
      %813 = sbr.rel (0) target = $region65
    $region64: #{tpu_custom_call.1} parent=1 // pred_region
      %815 = dma.done [#allocation5], 256
    $region65: #{tpu_custom_call.1} parent=1 // pred_fallthru
      _
    // Predicated region
    $region66: #{tpu_custom_call.1} parent=1 // pred_check
      _
    $region67: #{tpu_custom_call.1} parent=1 // pred_check_branch
      %817 = sbr.rel (0) target = $region69
    $region68: #{tpu_custom_call.1} parent=1 // pred_region
      %819 = dma.done [#allocation13], 256
    $region69: #{tpu_custom_call.1} parent=1 // pred_fallthru
      _
    %820 = vsyncpa [#allocation4], 1
    %821 = vsyncpa [#allocation7], 1
    %822 = vsyncpa [#allocation10], 1
    %823 = vsyncpa [#allocation5], 1
    %824 = vsyncpa [#allocation13], 1

</llo_original>
